<compile_context>
chip_gen: v6e
topology: v6e:2x2x1
jax: 0.10.0
libtpu: 0.0.40
codegen_flags: <defaults>
</compile_context>

<pallas_src>
import jax
import jax.numpy as jnp
from jax.experimental import pallas as pl
from jax.experimental.pallas import tpu as pltpu


def _copy_kernel(h_ref, o_ref):
    # Identity copy of the current tile of h.
    o_ref[...] = h_ref[...]


def _tiled_copy_2d(h2):
    """Pipelined identity copy of a 2-D array through VMEM."""
    rows, cols = h2.shape

    # Pick (8,128)-aligned, lane-dense tiles; fall back to the full extent when
    # the dimension is small or not tile-aligned (full-extent blocks are always
    # legal). 512 x 1024 f32 = 2 MiB/tile keeps double-buffered in/out tiles
    # well under the scoped-VMEM limits of v5e (16 MiB) and v7x (32 MiB).
    br = 512 if (rows > 512 and rows % 8 == 0) else rows
    bc = 1024 if (cols > 1024 and cols % 128 == 0) else cols
    grid = (pl.cdiv(rows, br), pl.cdiv(cols, bc))

    return pl.pallas_call(
        _copy_kernel,
        out_shape=jax.ShapeDtypeStruct(h2.shape, h2.dtype),
        grid_spec=pltpu.PrefetchScalarGridSpec(
            num_scalar_prefetch=0,
            grid=grid,
            in_specs=[pl.BlockSpec((br, bc), lambda i, j: (i, j))],
            out_specs=pl.BlockSpec((br, bc), lambda i, j: (i, j)),
        ),
        compiler_params=pltpu.CompilerParams(
            # Independent tile copies -> both axes parallel (lets v7x use both
            # TensorCores; neutral on single-TC v5e/v6e).
            dimension_semantics=("parallel", "parallel"),
        ),
    )(h2)


def pad_module_forward(x, h):
    """Pallas equivalent of PadModule.forward(x): returns h; x is ignored.

    x is intentionally NOT passed to the pallas_call (dead operand -> no DMA).
    """
    del x  # forward(x) ignores its input entirely

    orig_shape = h.shape
    # Non-2-D buffers (e.g. the default h = tensor([0])) are copied as a
    # lane-major (1, N) slab and reshaped back.
    h2 = h if h.ndim == 2 else h.reshape(1, -1)
    out = _tiled_copy_2d(h2)
    return out if h.ndim == 2 else out.reshape(orig_shape)


if __name__ == "__main__":
    key = jax.random.PRNGKey(0)
    kx, kh = jax.random.split(key)

    # x: NCHW input (ignored by the forward pass, as in the PyTorch module).
    x = jax.random.normal(kx, (2, 4, 16, 16), dtype=jnp.float32)

    # h: deterministic buffer registered at __init__ time. Shape chosen
    # TPU-tile friendly and large enough to exercise the tiled grid (2, 1)
    # while staying small (1 MiB of f32).
    h = jax.random.normal(kh, (1024, 256), dtype=jnp.float32)

    out = pad_module_forward(x, h)
    out = jax.block_until_ready(out)

    # Correctness check against the reference semantics: forward(x) == h.
    assert out.shape == h.shape and out.dtype == h.dtype
    assert bool(jnp.array_equal(out, h))

    print("KERNEL_OK")
</pallas_src>

<mosaic_0001>
module attributes {stable_mosaic.version = 11 : i64} {
  func.func @_copy_kernel(%arg0: i32, %arg1: i32, %arg2: memref<512x256xf32, #tpu.memory_space<vmem>>, %arg3: memref<512x256xf32, #tpu.memory_space<vmem>>) attributes {dimension_semantics = [#tpu.dimension_semantics<parallel>, #tpu.dimension_semantics<parallel>], iteration_bounds = array<i64: 2, 1>, scalar_prefetch = 0 : i64, scratch_operands = 0 : i64, tpu.core_type = #tpu.core_type<tc>, window_params = [{transform_indices = @transform_0, window_bounds = array<i64: 512, 256>}, {transform_indices = @transform_1, window_bounds = array<i64: 512, 256>}]} {
    %c0 = arith.constant 0 : index
    %c0_0 = arith.constant 0 : index
    %0 = vector.load %arg2[%c0, %c0_0] : memref<512x256xf32, #tpu.memory_space<vmem>>, vector<512x256xf32>
    %c0_1 = arith.constant 0 : index
    %c0_2 = arith.constant 0 : index
    %1 = vector.load %arg3[%c0_1, %c0_2] : memref<512x256xf32, #tpu.memory_space<vmem>>, vector<512x256xf32>
    tpu.vector_store %arg3[%c0_1, %c0_2], %0 {strides = array<i32>} : memref<512x256xf32, #tpu.memory_space<vmem>>, vector<512x256xf32>,
    return
  }
  func.func @transform_0(%arg0: i32, %arg1: i32) -> (i32, i32) {
    %c0_i32 = arith.constant 0 : i32
    return %arg0, %arg1 : i32, i32
  }
  func.func @transform_1(%arg0: i32, %arg1: i32) -> (i32, i32) {
    %c0_i32 = arith.constant 0 : i32
    return %arg0, %arg1 : i32, i32
  }
}

</mosaic_0001>

<llo_original>
// kernel: tpu_custom_call.1
$region0: #{tpu_custom_call.1}
  #allocation0 [shape = 'u32[]', space=smem, size = 0x4, offset = 0x4, fixed_abs, tag = 'smem constant byte address 0x4 - core index']
  #allocation1 [shape = 'u32[144,128]{1,0:T(1,128)}', space=vmem, size = 0x12000, scoped, tag = 'internal scratch']
  %s0 = inlined_call_operand.hbm [shape: f32[1024,256], index: 0, kind: input, shape index: {}]
  %s1 = inlined_call_operand.hbm [shape: f32[1024,256], index: 1, kind: output, shape index: {}]
  %s2 = sld [smem:[#allocation0]]
  $region41: #{tpu_custom_call.1} parent=0
    _
  %s4 = ssub.s32 1, %s2
  %s5 = scalar_select 0, %s4, %s2
  $region1: #{tpu_custom_call.1} parent=0
    #allocation2 [shape = 'u8[1048576]{0}', space=vmem, size = 0x100000, scoped, tag = 'input window, operand 0']
    #allocation3 [shape = 's32[2]{0}', space=sflag, size = 0x8, scoped, tag = 'scoped memory for tpu_custom_call.1']
    #allocation4 [shape = 's32[2]{0}', space=sflag, size = 0x8, scoped, tag = 'scoped memory for tpu_custom_call.1']
    #allocation5 [shape = 'u8[1048576]{0}', space=vmem, size = 0x100000, scoped, tag = 'output window, operand 0']
    %6 = vsyncpa [#allocation3], 0
    %s7 = scalar_lea.sflag [#allocation3], 1
    %8 = vsyncpa %s7, 0
    %9 = vsyncpa [#allocation4], 0
    %s10 = scalar_lea.sflag [#allocation4], 1
    %11 = vsyncpa %s10, 0
    loop: start=0, step=1, limit=4
    $region2: #{tpu_custom_call.1} parent=1 // loop_pre_header
      _
    $region3: #{tpu_custom_call.1} parent=1 // loop_header
      %s13 = sphi 0, %s17
      %p14 = scmp.ge.s32.totalorder %s13, 4
      %s20 = sphi 0, %s32
      %s21 = sphi 0, %s28
      %s22 = sphi 0, %s20
      %s23 = sphi 0, %s21
      %s24 = sphi 0, %s22
      %s25 = sphi 0, %s23
      %s37 = sphi 0, %s39
      %s40 = sphi 0, %s37
      %s41 = sphi 0, %s40
      %s57 = sphi 0, %s41
      %s65 = sphi 0, %s67
      %s68 = sphi 0, %s65
      %s69 = sphi 0, %s68
      %s85 = sphi 0, %s69
    $region4: #{tpu_custom_call.1} parent=1 // loop_header_branch
      %16 = sbr.rel (%p14) target = $region8
    $region5: #{tpu_custom_call.1} parent=1 // loop_body
      %s18 = ssub.s32 %s13, 1
      %s19 = ssub.s32 %s13, 2
      %s26 = sadd.s32 1, %s21
      %p27 = scmp.ge.s32.totalorder %s26, 1
      %s28 = scalar_select %p27, 0, %s26
      %s29 = sadd.s32 1, %s20
      %s30 = scalar_select %p27, %s29, %s20
      %p31 = scmp.ge.s32.totalorder %s30, 2
      %s32 = scalar_select %p31, 0, %s30
      %s33 = ssub.s32 %s20, %s32
      %s34 = ssub.s32 %s21, %s28
      %s35 = sor.u32 %s33, %s34
      %p36 = scmp.eq.s32.totalorder %s35, 0
      %s38 = sadd.s32 %s37, 1
      %s39 = scalar_select %p36, %s37, %s38
      %p42 = pneg %p36
      %p43 = scmp.eq.s32.totalorder %s13, 1
      %p44 = por %p42, %p43
      %p45 = scmp.ne.s32.totalorder %s37, %s40
      %p46 = scmp.eq.s32.totalorder %s13, 0
      %p47 = por %p45, %p46
      %p48 = scmp.ne.s32.totalorder %s37, %s40
      %p49 = scmp.eq.s32.totalorder %s18, 1
      %p50 = por %p48, %p49
      %p51 = scmp.ne.s32.totalorder %s40, %s41
      %p52 = scmp.eq.s32.totalorder %s18, 0
      %p53 = por %p51, %p52
      %p54 = scmp.ne.s32.totalorder %s40, %s41
      %p55 = scmp.eq.s32.totalorder %s19, 1
      %p56 = por %p54, %p55
      %p58 = scmp.ne.s32.totalorder %s41, %s57
      %p59 = scmp.eq.s32.totalorder %s19, 0
      %p60 = por %p58, %p59
      %s61 = ssub.s32 %s20, %s32
      %s62 = ssub.s32 %s21, %s28
      %s63 = sor.u32 %s61, %s62
      %p64 = scmp.eq.s32.totalorder %s63, 0
      %s66 = sadd.s32 %s65, 1
      %s67 = scalar_select %p64, %s65, %s66
      %p70 = pneg %p64
      %p71 = scmp.eq.s32.totalorder %s13, 1
      %p72 = por %p70, %p71
      %p73 = scmp.ne.s32.totalorder %s65, %s68
      %p74 = scmp.eq.s32.totalorder %s13, 0
      %p75 = por %p73, %p74
      %p76 = scmp.ne.s32.totalorder %s65, %s68
      %p77 = scmp.eq.s32.totalorder %s18, 1
      %p78 = por %p76, %p77
      %p79 = scmp.ne.s32.totalorder %s68, %s69
      %p80 = scmp.eq.s32.totalorder %s18, 0
      %p81 = por %p79, %p80
      %p82 = scmp.ne.s32.totalorder %s68, %s69
      %p83 = scmp.eq.s32.totalorder %s19, 1
      %p84 = por %p82, %p83
      %p86 = scmp.ne.s32.totalorder %s69, %s85
      %p87 = scmp.eq.s32.totalorder %s19, 0
      %p88 = por %p86, %p87
      %p89 = scmp.le.s32.totalorder 1, %s13
      %p90 = scmp.lt.s32.totalorder %s13, 3
      %p91 = pnand %p89, %p90
      %p92 = pneg %p91
      // Predicated region
      $region9: #{tpu_custom_call.1} parent=5 // pred_check
        _
      $region10: #{tpu_custom_call.1} parent=5 // pred_check_branch
        %94 = sbr.rel (%p91) target = $region12
      $region11: #{tpu_custom_call.1} parent=5 // pred_region
        %s95 = ssub.s32 %s13, 1
      $region12: #{tpu_custom_call.1} parent=5 // pred_fallthru
        _
      %p96 = scmp.lt.s32.totalorder %s13, 2
      // Predicated region
      $region13: #{tpu_custom_call.1} parent=5 // pred_check
        %p97 = pneg %p96
      $region14: #{tpu_custom_call.1} parent=5 // pred_check_branch
        %99 = sbr.rel (%p97) target = $region16
      $region15: #{tpu_custom_call.1} parent=5 // pred_region
        // Predicated region
        $region17: #{tpu_custom_call.1} parent=15 // pred_check
          %p100 = pneg %p47
        $region18: #{tpu_custom_call.1} parent=15 // pred_check_branch
          %102 = sbr.rel (%p100) target = $region20
        $region19: #{tpu_custom_call.1} parent=15 // pred_region
          %s103 = sand.u32 %s37, 1
          %s104 = scalar_lea.sflag [#allocation3], %s103
          %s105 = sand.u32 %s37, 1
          %s106 = smul.addr %s105, 1024
          %s107 = scalar_lea.vmem [#allocation2], %s106
          %s108 = smul.u32 64, %s20
          %s109 = smul.u32 2, %s21
          %s111 = ssub.s32 16384, 16384
          %112 = vsyncadd %s104, %s111
          %s113 = smul.addr %s108, 2
          %s114 = sadd.s32 %s109, %s113
          %s115 = smul.addr %s114, 128
          %s116 = scalar_lea.hbm %s0, %s115
          %s117 = sshll.u32 %s107, 4
          %s118 = int_to_ptr.vmem [resolvable:$true] %s117
          %123 = dma.hbm_to_vmem [thread:$0]  %s116, 16384, %s118, %s104, 256, 256, 16
        $region20: #{tpu_custom_call.1} parent=15 // pred_fallthru
          _
      $region16: #{tpu_custom_call.1} parent=5 // pred_fallthru
        _
      %p124 = scmp.le.s32.totalorder 1, %s13
      %p125 = scmp.lt.s32.totalorder %s13, 3
      %p126 = pnand %p124, %p125
      %p127 = pneg %p126
      // Predicated region
      $region21: #{tpu_custom_call.1} parent=5 // pred_check
        _
      $region22: #{tpu_custom_call.1} parent=5 // pred_check_branch
        %129 = sbr.rel (%p126) target = $region24
      $region23: #{tpu_custom_call.1} parent=5 // pred_region
        %s130 = ssub.s32 %s13, 1
        %s131 = sand.u32 %s40, 1
        %s132 = scalar_lea.sflag [#allocation3], %s131
        %s133 = sand.u32 %s40, 1
        %s134 = smul.addr %s133, 1024
        %s135 = scalar_lea.vmem [#allocation2], %s134
        // Predicated region
        $region25: #{tpu_custom_call.1} parent=23 // pred_check
          %p136 = pneg %p53
        $region26: #{tpu_custom_call.1} parent=23 // pred_check_branch
          %138 = sbr.rel (%p136) target = $region28
        $region27: #{tpu_custom_call.1} parent=23 // pred_region
          %139 = dma.done %s132, 16384
        $region28: #{tpu_custom_call.1} parent=23 // pred_fallthru
          _
        %s140 = sand.u32 %s40, 1
        %s141 = scalar_lea.sflag [#allocation3], %s140
        %s142 = sand.u32 %s40, 1
        %s143 = smul.addr %s142, 1024
        %s144 = scalar_lea.vmem [#allocation2], %s143
        %p145 = pneg %p53
        %p146 = pneg %p50
        %p147 = pneg %p81
        %p148 = pneg %p78
        %s149 = sand.u32 %s68, 1
        %s150 = scalar_lea.sflag [#allocation4], %s149
        %s151 = sand.u32 %s68, 1
        %s152 = smul.addr %s151, 1024
        %s153 = scalar_lea.vmem [#allocation5], %s152
        %s154 = smul.u32 64, %s22
        %s155 = smul.u32 2, %s23
        %s156 = smul.u32 64, %s22
        %s157 = smul.u32 2, %s23
        %v158 = vld [vmem:[%s135] sm:$0xff]
        %v159 = vld [vmem:[%s135 + $0x8] sm:$0xff]
        %v160 = vld [vmem:[%s135 + $0x10] sm:$0xff]
        %v161 = vld [vmem:[%s135 + $0x18] sm:$0xff]
        %v162 = vld [vmem:[%s135 + $0x20] sm:$0xff]
        %v163 = vld [vmem:[%s135 + $0x28] sm:$0xff]
        %v164 = vld [vmem:[%s135 + $0x30] sm:$0xff]
        %v165 = vld [vmem:[%s135 + $0x38] sm:$0xff]
        %v166 = vld [vmem:[%s135 + $0x40] sm:$0xff]
        %v167 = vld [vmem:[%s135 + $0x48] sm:$0xff]
        %v168 = vld [vmem:[%s135 + $0x50] sm:$0xff]
        %v169 = vld [vmem:[%s135 + $0x58] sm:$0xff]
        %v170 = vld [vmem:[%s135 + $0x60] sm:$0xff]
        %v171 = vld [vmem:[%s135 + $0x68] sm:$0xff]
        %v172 = vld [vmem:[%s135 + $0x70] sm:$0xff]
        %v173 = vld [vmem:[%s135 + $0x78] sm:$0xff]
        %v174 = vld [vmem:[%s135 + $0x80] sm:$0xff]
        %v175 = vld [vmem:[%s135 + $0x88] sm:$0xff]
        %v176 = vld [vmem:[%s135 + $0x90] sm:$0xff]
        %v177 = vld [vmem:[%s135 + $0x98] sm:$0xff]
        %v178 = vld [vmem:[%s135 + $0xa0] sm:$0xff]
        %v179 = vld [vmem:[%s135 + $0xa8] sm:$0xff]
        %v180 = vld [vmem:[%s135 + $0xb0] sm:$0xff]
        %v181 = vld [vmem:[%s135 + $0xb8] sm:$0xff]
        %v182 = vld [vmem:[%s135 + $0xc0] sm:$0xff]
        %v183 = vld [vmem:[%s135 + $0xc8] sm:$0xff]
        %v184 = vld [vmem:[%s135 + $0xd0] sm:$0xff]
        %v185 = vld [vmem:[%s135 + $0xd8] sm:$0xff]
        %v186 = vld [vmem:[%s135 + $0xe0] sm:$0xff]
        %v187 = vld [vmem:[%s135 + $0xe8] sm:$0xff]
        %v188 = vld [vmem:[%s135 + $0xf0] sm:$0xff]
        %v189 = vld [vmem:[%s135 + $0xf8] sm:$0xff]
        %v190 = vld [vmem:[%s135 + $0x100] sm:$0xff]
        %v191 = vld [vmem:[%s135 + $0x108] sm:$0xff]
        %v192 = vld [vmem:[%s135 + $0x110] sm:$0xff]
        %v193 = vld [vmem:[%s135 + $0x118] sm:$0xff]
        %v194 = vld [vmem:[%s135 + $0x120] sm:$0xff]
        %v195 = vld [vmem:[%s135 + $0x128] sm:$0xff]
        %v196 = vld [vmem:[%s135 + $0x130] sm:$0xff]
        %v197 = vld [vmem:[%s135 + $0x138] sm:$0xff]
        %v198 = vld [vmem:[%s135 + $0x140] sm:$0xff]
        %v199 = vld [vmem:[%s135 + $0x148] sm:$0xff]
        %v200 = vld [vmem:[%s135 + $0x150] sm:$0xff]
        %v201 = vld [vmem:[%s135 + $0x158] sm:$0xff]
        %v202 = vld [vmem:[%s135 + $0x160] sm:$0xff]
        %v203 = vld [vmem:[%s135 + $0x168] sm:$0xff]
        %v204 = vld [vmem:[%s135 + $0x170] sm:$0xff]
        %v205 = vld [vmem:[%s135 + $0x178] sm:$0xff]
        %v206 = vld [vmem:[%s135 + $0x180] sm:$0xff]
        %v207 = vld [vmem:[%s135 + $0x188] sm:$0xff]
        %v208 = vld [vmem:[%s135 + $0x190] sm:$0xff]
        %v209 = vld [vmem:[%s135 + $0x198] sm:$0xff]
        %v210 = vld [vmem:[%s135 + $0x1a0] sm:$0xff]
        %v211 = vld [vmem:[%s135 + $0x1a8] sm:$0xff]
        %v212 = vld [vmem:[%s135 + $0x1b0] sm:$0xff]
        %v213 = vld [vmem:[%s135 + $0x1b8] sm:$0xff]
        %v214 = vld [vmem:[%s135 + $0x1c0] sm:$0xff]
        %v215 = vld [vmem:[%s135 + $0x1c8] sm:$0xff]
        %v216 = vld [vmem:[%s135 + $0x1d0] sm:$0xff]
        %v217 = vld [vmem:[%s135 + $0x1d8] sm:$0xff]
        %v218 = vld [vmem:[%s135 + $0x1e0] sm:$0xff]
        %v219 = vld [vmem:[%s135 + $0x1e8] sm:$0xff]
        %v220 = vld [vmem:[%s135 + $0x1f0] sm:$0xff]
        %v221 = vld [vmem:[%s135 + $0x1f8] sm:$0xff]
        %v222 = vld [vmem:[%s135 + $0x200] sm:$0xff]
        %v223 = vld [vmem:[%s135 + $0x208] sm:$0xff]
        %v224 = vld [vmem:[%s135 + $0x210] sm:$0xff]
        %v225 = vld [vmem:[%s135 + $0x218] sm:$0xff]
        %v226 = vld [vmem:[%s135 + $0x220] sm:$0xff]
        %v227 = vld [vmem:[%s135 + $0x228] sm:$0xff]
        %v228 = vld [vmem:[%s135 + $0x230] sm:$0xff]
        %v229 = vld [vmem:[%s135 + $0x238] sm:$0xff]
        %v230 = vld [vmem:[%s135 + $0x240] sm:$0xff]
        %v231 = vld [vmem:[%s135 + $0x248] sm:$0xff]
        %v232 = vld [vmem:[%s135 + $0x250] sm:$0xff]
        %v233 = vld [vmem:[%s135 + $0x258] sm:$0xff]
        %v234 = vld [vmem:[%s135 + $0x260] sm:$0xff]
        %v235 = vld [vmem:[%s135 + $0x268] sm:$0xff]
        %v236 = vld [vmem:[%s135 + $0x270] sm:$0xff]
        %v237 = vld [vmem:[%s135 + $0x278] sm:$0xff]
        %v238 = vld [vmem:[%s135 + $0x280] sm:$0xff]
        %v239 = vld [vmem:[%s135 + $0x288] sm:$0xff]
        %v240 = vld [vmem:[%s135 + $0x290] sm:$0xff]
        %v241 = vld [vmem:[%s135 + $0x298] sm:$0xff]
        %v242 = vld [vmem:[%s135 + $0x2a0] sm:$0xff]
        %v243 = vld [vmem:[%s135 + $0x2a8] sm:$0xff]
        %v244 = vld [vmem:[%s135 + $0x2b0] sm:$0xff]
        %v245 = vld [vmem:[%s135 + $0x2b8] sm:$0xff]
        %v246 = vld [vmem:[%s135 + $0x2c0] sm:$0xff]
        %v247 = vld [vmem:[%s135 + $0x2c8] sm:$0xff]
        %v248 = vld [vmem:[%s135 + $0x2d0] sm:$0xff]
        %v249 = vld [vmem:[%s135 + $0x2d8] sm:$0xff]
        %v250 = vld [vmem:[%s135 + $0x2e0] sm:$0xff]
        %v251 = vld [vmem:[%s135 + $0x2e8] sm:$0xff]
        %v252 = vld [vmem:[%s135 + $0x2f0] sm:$0xff]
        %v253 = vld [vmem:[%s135 + $0x2f8] sm:$0xff]
        %v254 = vld [vmem:[%s135 + $0x300] sm:$0xff]
        %v255 = vld [vmem:[%s135 + $0x308] sm:$0xff]
        %v256 = vld [vmem:[%s135 + $0x310] sm:$0xff]
        %v257 = vld [vmem:[%s135 + $0x318] sm:$0xff]
        %v258 = vld [vmem:[%s135 + $0x320] sm:$0xff]
        %v259 = vld [vmem:[%s135 + $0x328] sm:$0xff]
        %v260 = vld [vmem:[%s135 + $0x330] sm:$0xff]
        %v261 = vld [vmem:[%s135 + $0x338] sm:$0xff]
        %v262 = vld [vmem:[%s135 + $0x340] sm:$0xff]
        %v263 = vld [vmem:[%s135 + $0x348] sm:$0xff]
        %v264 = vld [vmem:[%s135 + $0x350] sm:$0xff]
        %v265 = vld [vmem:[%s135 + $0x358] sm:$0xff]
        %v266 = vld [vmem:[%s135 + $0x360] sm:$0xff]
        %v267 = vld [vmem:[%s135 + $0x368] sm:$0xff]
        %v268 = vld [vmem:[%s135 + $0x370] sm:$0xff]
        %v269 = vld [vmem:[%s135 + $0x378] sm:$0xff]
        %v270 = vld [vmem:[%s135 + $0x380] sm:$0xff]
        %v271 = vld [vmem:[%s135 + $0x388] sm:$0xff]
        %v272 = vld [vmem:[%s135 + $0x390] sm:$0xff]
        %v273 = vld [vmem:[%s135 + $0x398] sm:$0xff]
        %v274 = vld [vmem:[%s135 + $0x3a0] sm:$0xff]
        %v275 = vld [vmem:[%s135 + $0x3a8] sm:$0xff]
        %v276 = vld [vmem:[%s135 + $0x3b0] sm:$0xff]
        %v277 = vld [vmem:[%s135 + $0x3b8] sm:$0xff]
        %v278 = vld [vmem:[%s135 + $0x3c0] sm:$0xff]
        %v279 = vld [vmem:[%s135 + $0x3c8] sm:$0xff]
        %v280 = vld [vmem:[%s135 + $0x3d0] sm:$0xff]
        %v281 = vld [vmem:[%s135 + $0x3d8] sm:$0xff]
        %v282 = vld [vmem:[%s135 + $0x3e0] sm:$0xff]
        %v283 = vld [vmem:[%s135 + $0x3e8] sm:$0xff]
        %v284 = vld [vmem:[%s135 + $0x3f0] sm:$0xff]
        %v285 = vld [vmem:[%s135 + $0x3f8] sm:$0xff]
        %286 = vst [vmem:[%s153] sm:$0xff] %v158
        %287 = vst [vmem:[%s153 + $0x8] sm:$0xff] %v159
        %288 = vst [vmem:[%s153 + $0x10] sm:$0xff] %v160
        %289 = vst [vmem:[%s153 + $0x18] sm:$0xff] %v161
        %290 = vst [vmem:[%s153 + $0x20] sm:$0xff] %v162
        %291 = vst [vmem:[%s153 + $0x28] sm:$0xff] %v163
        %292 = vst [vmem:[%s153 + $0x30] sm:$0xff] %v164
        %293 = vst [vmem:[%s153 + $0x38] sm:$0xff] %v165
        %294 = vst [vmem:[%s153 + $0x40] sm:$0xff] %v166
        %295 = vst [vmem:[%s153 + $0x48] sm:$0xff] %v167
        %296 = vst [vmem:[%s153 + $0x50] sm:$0xff] %v168
        %297 = vst [vmem:[%s153 + $0x58] sm:$0xff] %v169
        %298 = vst [vmem:[%s153 + $0x60] sm:$0xff] %v170
        %299 = vst [vmem:[%s153 + $0x68] sm:$0xff] %v171
        %300 = vst [vmem:[%s153 + $0x70] sm:$0xff] %v172
        %301 = vst [vmem:[%s153 + $0x78] sm:$0xff] %v173
        %302 = vst [vmem:[%s153 + $0x80] sm:$0xff] %v174
        %303 = vst [vmem:[%s153 + $0x88] sm:$0xff] %v175
        %304 = vst [vmem:[%s153 + $0x90] sm:$0xff] %v176
        %305 = vst [vmem:[%s153 + $0x98] sm:$0xff] %v177
        %306 = vst [vmem:[%s153 + $0xa0] sm:$0xff] %v178
        %307 = vst [vmem:[%s153 + $0xa8] sm:$0xff] %v179
        %308 = vst [vmem:[%s153 + $0xb0] sm:$0xff] %v180
        %309 = vst [vmem:[%s153 + $0xb8] sm:$0xff] %v181
        %310 = vst [vmem:[%s153 + $0xc0] sm:$0xff] %v182
        %311 = vst [vmem:[%s153 + $0xc8] sm:$0xff] %v183
        %312 = vst [vmem:[%s153 + $0xd0] sm:$0xff] %v184
        %313 = vst [vmem:[%s153 + $0xd8] sm:$0xff] %v185
        %314 = vst [vmem:[%s153 + $0xe0] sm:$0xff] %v186
        %315 = vst [vmem:[%s153 + $0xe8] sm:$0xff] %v187
        %316 = vst [vmem:[%s153 + $0xf0] sm:$0xff] %v188
        %317 = vst [vmem:[%s153 + $0xf8] sm:$0xff] %v189
        %318 = vst [vmem:[%s153 + $0x100] sm:$0xff] %v190
        %319 = vst [vmem:[%s153 + $0x108] sm:$0xff] %v191
        %320 = vst [vmem:[%s153 + $0x110] sm:$0xff] %v192
        %321 = vst [vmem:[%s153 + $0x118] sm:$0xff] %v193
        %322 = vst [vmem:[%s153 + $0x120] sm:$0xff] %v194
        %323 = vst [vmem:[%s153 + $0x128] sm:$0xff] %v195
        %324 = vst [vmem:[%s153 + $0x130] sm:$0xff] %v196
        %325 = vst [vmem:[%s153 + $0x138] sm:$0xff] %v197
        %326 = vst [vmem:[%s153 + $0x140] sm:$0xff] %v198
        %327 = vst [vmem:[%s153 + $0x148] sm:$0xff] %v199
        %328 = vst [vmem:[%s153 + $0x150] sm:$0xff] %v200
        %329 = vst [vmem:[%s153 + $0x158] sm:$0xff] %v201
        %330 = vst [vmem:[%s153 + $0x160] sm:$0xff] %v202
        %331 = vst [vmem:[%s153 + $0x168] sm:$0xff] %v203
        %332 = vst [vmem:[%s153 + $0x170] sm:$0xff] %v204
        %333 = vst [vmem:[%s153 + $0x178] sm:$0xff] %v205
        %334 = vst [vmem:[%s153 + $0x180] sm:$0xff] %v206
        %335 = vst [vmem:[%s153 + $0x188] sm:$0xff] %v207
        %336 = vst [vmem:[%s153 + $0x190] sm:$0xff] %v208
        %337 = vst [vmem:[%s153 + $0x198] sm:$0xff] %v209
        %338 = vst [vmem:[%s153 + $0x1a0] sm:$0xff] %v210
        %339 = vst [vmem:[%s153 + $0x1a8] sm:$0xff] %v211
        %340 = vst [vmem:[%s153 + $0x1b0] sm:$0xff] %v212
        %341 = vst [vmem:[%s153 + $0x1b8] sm:$0xff] %v213
        %342 = vst [vmem:[%s153 + $0x1c0] sm:$0xff] %v214
        %343 = vst [vmem:[%s153 + $0x1c8] sm:$0xff] %v215
        %344 = vst [vmem:[%s153 + $0x1d0] sm:$0xff] %v216
        %345 = vst [vmem:[%s153 + $0x1d8] sm:$0xff] %v217
        %346 = vst [vmem:[%s153 + $0x1e0] sm:$0xff] %v218
        %347 = vst [vmem:[%s153 + $0x1e8] sm:$0xff] %v219
        %348 = vst [vmem:[%s153 + $0x1f0] sm:$0xff] %v220
        %349 = vst [vmem:[%s153 + $0x1f8] sm:$0xff] %v221
        %350 = vst [vmem:[%s153 + $0x200] sm:$0xff] %v222
        %351 = vst [vmem:[%s153 + $0x208] sm:$0xff] %v223
        %352 = vst [vmem:[%s153 + $0x210] sm:$0xff] %v224
        %353 = vst [vmem:[%s153 + $0x218] sm:$0xff] %v225
        %354 = vst [vmem:[%s153 + $0x220] sm:$0xff] %v226
        %355 = vst [vmem:[%s153 + $0x228] sm:$0xff] %v227
        %356 = vst [vmem:[%s153 + $0x230] sm:$0xff] %v228
        %357 = vst [vmem:[%s153 + $0x238] sm:$0xff] %v229
        %358 = vst [vmem:[%s153 + $0x240] sm:$0xff] %v230
        %359 = vst [vmem:[%s153 + $0x248] sm:$0xff] %v231
        %360 = vst [vmem:[%s153 + $0x250] sm:$0xff] %v232
        %361 = vst [vmem:[%s153 + $0x258] sm:$0xff] %v233
        %362 = vst [vmem:[%s153 + $0x260] sm:$0xff] %v234
        %363 = vst [vmem:[%s153 + $0x268] sm:$0xff] %v235
        %364 = vst [vmem:[%s153 + $0x270] sm:$0xff] %v236
        %365 = vst [vmem:[%s153 + $0x278] sm:$0xff] %v237
        %366 = vst [vmem:[%s153 + $0x280] sm:$0xff] %v238
        %367 = vst [vmem:[%s153 + $0x288] sm:$0xff] %v239
        %368 = vst [vmem:[%s153 + $0x290] sm:$0xff] %v240
        %369 = vst [vmem:[%s153 + $0x298] sm:$0xff] %v241
        %370 = vst [vmem:[%s153 + $0x2a0] sm:$0xff] %v242
        %371 = vst [vmem:[%s153 + $0x2a8] sm:$0xff] %v243
        %372 = vst [vmem:[%s153 + $0x2b0] sm:$0xff] %v244
        %373 = vst [vmem:[%s153 + $0x2b8] sm:$0xff] %v245
        %374 = vst [vmem:[%s153 + $0x2c0] sm:$0xff] %v246
        %375 = vst [vmem:[%s153 + $0x2c8] sm:$0xff] %v247
        %376 = vst [vmem:[%s153 + $0x2d0] sm:$0xff] %v248
        %377 = vst [vmem:[%s153 + $0x2d8] sm:$0xff] %v249
        %378 = vst [vmem:[%s153 + $0x2e0] sm:$0xff] %v250
        %379 = vst [vmem:[%s153 + $0x2e8] sm:$0xff] %v251
        %380 = vst [vmem:[%s153 + $0x2f0] sm:$0xff] %v252
        %381 = vst [vmem:[%s153 + $0x2f8] sm:$0xff] %v253
        %382 = vst [vmem:[%s153 + $0x300] sm:$0xff] %v254
        %383 = vst [vmem:[%s153 + $0x308] sm:$0xff] %v255
        %384 = vst [vmem:[%s153 + $0x310] sm:$0xff] %v256
        %385 = vst [vmem:[%s153 + $0x318] sm:$0xff] %v257
        %386 = vst [vmem:[%s153 + $0x320] sm:$0xff] %v258
        %387 = vst [vmem:[%s153 + $0x328] sm:$0xff] %v259
        %388 = vst [vmem:[%s153 + $0x330] sm:$0xff] %v260
        %389 = vst [vmem:[%s153 + $0x338] sm:$0xff] %v261
        %390 = vst [vmem:[%s153 + $0x340] sm:$0xff] %v262
        %391 = vst [vmem:[%s153 + $0x348] sm:$0xff] %v263
        %392 = vst [vmem:[%s153 + $0x350] sm:$0xff] %v264
        %393 = vst [vmem:[%s153 + $0x358] sm:$0xff] %v265
        %394 = vst [vmem:[%s153 + $0x360] sm:$0xff] %v266
        %395 = vst [vmem:[%s153 + $0x368] sm:$0xff] %v267
        %396 = vst [vmem:[%s153 + $0x370] sm:$0xff] %v268
        %397 = vst [vmem:[%s153 + $0x378] sm:$0xff] %v269
        %398 = vst [vmem:[%s153 + $0x380] sm:$0xff] %v270
        %399 = vst [vmem:[%s153 + $0x388] sm:$0xff] %v271
        %400 = vst [vmem:[%s153 + $0x390] sm:$0xff] %v272
        %401 = vst [vmem:[%s153 + $0x398] sm:$0xff] %v273
        %402 = vst [vmem:[%s153 + $0x3a0] sm:$0xff] %v274
        %403 = vst [vmem:[%s153 + $0x3a8] sm:$0xff] %v275
        %404 = vst [vmem:[%s153 + $0x3b0] sm:$0xff] %v276
        %405 = vst [vmem:[%s153 + $0x3b8] sm:$0xff] %v277
        %406 = vst [vmem:[%s153 + $0x3c0] sm:$0xff] %v278
        %407 = vst [vmem:[%s153 + $0x3c8] sm:$0xff] %v279
        %408 = vst [vmem:[%s153 + $0x3d0] sm:$0xff] %v280
        %409 = vst [vmem:[%s153 + $0x3d8] sm:$0xff] %v281
        %410 = vst [vmem:[%s153 + $0x3e0] sm:$0xff] %v282
        %411 = vst [vmem:[%s153 + $0x3e8] sm:$0xff] %v283
        %412 = vst [vmem:[%s153 + $0x3f0] sm:$0xff] %v284
        %413 = vst [vmem:[%s153 + $0x3f8] sm:$0xff] %v285
        %s414 = sand.u32 %s68, 1
        %s415 = scalar_lea.sflag [#allocation4], %s414
        %s416 = sand.u32 %s68, 1
        %s417 = smul.addr %s416, 1024
        %s418 = scalar_lea.vmem [#allocation5], %s417
        // Predicated region
        $region29: #{tpu_custom_call.1} parent=23 // pred_check
          %p419 = pneg %p78
        $region30: #{tpu_custom_call.1} parent=23 // pred_check_branch
          %421 = sbr.rel (%p419) target = $region32
        $region31: #{tpu_custom_call.1} parent=23 // pred_region
          %s422 = smul.u32 64, %s22
          %s423 = smul.u32 2, %s23
          %s425 = ssub.s32 16384, 16384
          %426 = vsyncadd %s415, %s425
          %s427 = smul.addr %s422, 2
          %s428 = sadd.s32 %s423, %s427
          %s429 = smul.addr %s428, 128
          %s430 = scalar_lea.hbm %s1, %s429
          %s431 = sshll.u32 %s418, 4
          %s432 = int_to_ptr.vmem [resolvable:$true] %s431
          %437 = dma.vmem_to_hbm [thread:$0]  %s432, 16384, %s430, %s415, 256, 256, 16
        $region32: #{tpu_custom_call.1} parent=23 // pred_fallthru
          _
      $region24: #{tpu_custom_call.1} parent=5 // pred_fallthru
        _
      %p438 = scmp.le.s32.totalorder 2, %s13
      // Predicated region
      $region33: #{tpu_custom_call.1} parent=5 // pred_check
        %p439 = pneg %p438
      $region34: #{tpu_custom_call.1} parent=5 // pred_check_branch
        %441 = sbr.rel (%p439) target = $region36
      $region35: #{tpu_custom_call.1} parent=5 // pred_region
        %s442 = ssub.s32 %s13, 2
        // Predicated region
        $region37: #{tpu_custom_call.1} parent=35 // pred_check
          %p443 = pneg %p84
        $region38: #{tpu_custom_call.1} parent=35 // pred_check_branch
          %445 = sbr.rel (%p443) target = $region40
        $region39: #{tpu_custom_call.1} parent=35 // pred_region
          %s446 = sand.u32 %s69, 1
          %s447 = scalar_lea.sflag [#allocation4], %s446
          %s448 = sand.u32 %s69, 1
          %s449 = smul.addr %s448, 1024
          %s450 = scalar_lea.vmem [#allocation5], %s449
          %451 = dma.done %s447, 16384
        $region40: #{tpu_custom_call.1} parent=35 // pred_fallthru
          _
      $region36: #{tpu_custom_call.1} parent=5 // pred_fallthru
        _
    $region6: #{tpu_custom_call.1} parent=1 // loop_footer
      %s17 = sadd.s32 1, %s13
    $region7: #{tpu_custom_call.1} parent=1 // loop_footer_branch
      %12 = sbr.rel target = $region3
    $region8: #{tpu_custom_call.1} parent=1 // loop_exit
      _
    %452 = vsyncpa [#allocation3], 1
    %s453 = scalar_lea.sflag [#allocation3], 1
    %454 = vsyncpa %s453, 1
    %455 = vsyncpa [#allocation4], 1
    %s456 = scalar_lea.sflag [#allocation4], 1
    %457 = vsyncpa %s456, 1

</llo_original>
